<compile_context>
chip_gen: v6e
topology: v6e:2x2x1
jax: 0.10.0
libtpu: 0.0.40
codegen_flags: <defaults>
</compile_context>

<pallas_src>
import functools

import jax
import jax.numpy as jnp
from jax.experimental import pallas as pl
from jax.experimental.pallas import tpu as pltpu


# ----------------------------- Pallas kernels -----------------------------

def _ln_withbias_kernel(x_ref, w_ref, b_ref, o_ref, *, eps, inv_c):
    # x: (1, C, hw_t)  -- normalize over C (axis=1, sublanes); lanes = HW.
    x = x_ref[...].astype(jnp.float32)
    s1 = jnp.sum(x, axis=1, keepdims=True)           # one pass over x
    s2 = jnp.sum(x * x, axis=1, keepdims=True)
    mu = s1 * inv_c
    var = jnp.maximum(s2 * inv_c - mu * mu, 0.0)      # E[x^2] - mu^2, clamped
    inv = jax.lax.rsqrt(var + eps)                    # EUP, keeps VALU free
    y = (x - mu) * inv * w_ref[...] + b_ref[...]
    o_ref[...] = y.astype(o_ref.dtype)


def _ln_biasfree_kernel(x_ref, w_ref, o_ref, *, eps, inv_c):
    # BiasFree_LayerNorm: x / sqrt(var + eps) * w   (x NOT mean-centered,
    # but var IS the mean-centered population variance).
    x = x_ref[...].astype(jnp.float32)
    s1 = jnp.sum(x, axis=1, keepdims=True)
    s2 = jnp.sum(x * x, axis=1, keepdims=True)
    mu = s1 * inv_c
    var = jnp.maximum(s2 * inv_c - mu * mu, 0.0)
    inv = jax.lax.rsqrt(var + eps)
    o_ref[...] = (x * inv * w_ref[...]).astype(o_ref.dtype)


# ----------------------------- tiling helpers -----------------------------

def _round_up(x, m):
    return ((x + m - 1) // m) * m


def _block_budget_bytes():
    """Per-block HBM/VMEM budget, generation-aware but safe everywhere.
    v6e: lots of VMEM headroom -> bigger blocks; v7x: only 64 MiB physical
    VMEM -> cap at ~4 MiB; v5e: 16 MiB scoped default -> stay small (we raise
    vmem_limit_bytes explicitly anyway, but 3 MiB already amortises its
    ~0.8 TB/s HBM)."""
    try:
        kind = jax.devices()[0].device_kind.lower()
    except Exception:
        return 4 << 20
    if "v5 lite" in kind or "v5e" in kind or "v5litepod" in kind:
        return 3 << 20
    if "v6" in kind:
        return 6 << 20
    return 4 << 20  # v7x and anything unknown


def _pick_hw_tile(HW, C, itemsize, budget_bytes, batch):
    """Lane-aligned (multiple-of-128) HW tile sized to ~budget_bytes per input
    block.  Ragged last tile handled by a cdiv grid, so no divisor search and
    no whole-HW fallback."""
    if HW <= 128:
        return HW                                    # full-dim block is legal
    per_col_bytes = max(C, 1) * itemsize * 128       # bytes per 128-lane column
    t = max(128, (budget_bytes // per_col_bytes) * 128)
    t = min(t, _round_up(HW, 128))
    if batch == 1:
        # Guarantee >= 2 grid steps along a "parallel" axis so both v7x
        # TensorCores get work for single-image inference.
        t = min(t, max(128, _round_up(pl.cdiv(HW, 2), 128)))
    return t


# ----------------------------- wrapper -----------------------------

def layer_norm(x, weight, bias=None, layer_norm_type="WithBias", eps=1e-5):
    """LayerNorm over the channel dim of an NCHW tensor.

    Equivalent to the torch module:
        to_4d(WithBias/BiasFree_LayerNorm(to_3d(x)), h, w)
    computed on the free (B, C, H*W) view (no transposes), reducing over C.
    Output dtype == input dtype.
    """
    B, C, H, W = x.shape
    HW = H * W
    xr = x.reshape(B, C, HW)                          # free view, native dtype

    bias_free = (layer_norm_type == "BiasFree")
    w = weight.reshape(1, C, 1).astype(jnp.float32)

    itemsize = jnp.dtype(x.dtype).itemsize
    hw_t = _pick_hw_tile(HW, C, itemsize, _block_budget_bytes(), B)
    grid = (B, pl.cdiv(HW, hw_t))

    # VMEM: 2x(in) + 2x(out) double buffers + params + headroom.
    block_bytes = C * hw_t * itemsize
    vmem_limit = int(min(4 * block_bytes + (4 << 20), 48 << 20))

    x_spec = pl.BlockSpec((1, C, hw_t), lambda bi, j: (bi, 0, j))
    p_spec = pl.BlockSpec((1, C, 1), lambda bi, j: (0, 0, 0))
    out_spec = pl.BlockSpec((1, C, hw_t), lambda bi, j: (bi, 0, j))
    cparams = pltpu.CompilerParams(
        dimension_semantics=("parallel", "parallel"),
        vmem_limit_bytes=vmem_limit)
    out_shape = jax.ShapeDtypeStruct((B, C, HW), x.dtype)

    if bias_free:
        out = pl.pallas_call(
            functools.partial(_ln_biasfree_kernel, eps=eps, inv_c=1.0 / C),
            grid=grid,
            in_specs=[x_spec, p_spec],
            out_specs=out_spec,
            out_shape=out_shape,
            compiler_params=cparams,
        )(xr, w)
    else:
        b = (jnp.zeros((C,), jnp.float32) if bias is None else bias)
        b = b.reshape(1, C, 1).astype(jnp.float32)
        out = pl.pallas_call(
            functools.partial(_ln_withbias_kernel, eps=eps, inv_c=1.0 / C),
            grid=grid,
            in_specs=[x_spec, p_spec, p_spec],
            out_specs=out_spec,
            out_shape=out_shape,
            compiler_params=cparams,
        )(xr, w, b)

    return out.reshape(B, C, H, W)


# ----------------------------- pure-JAX reference -----------------------------

def _ref_layer_norm(x, weight, bias, layer_norm_type, eps=1e-5):
    # Mirrors torch: to_3d -> LN over last dim -> to_4d.  Computed in f32.
    B, C, H, W = x.shape
    t = jnp.transpose(x.astype(jnp.float32), (0, 2, 3, 1)).reshape(B, H * W, C)
    mu = jnp.mean(t, -1, keepdims=True)
    var = jnp.mean(jnp.square(t - mu), -1, keepdims=True)
    wf = weight.astype(jnp.float32)
    if layer_norm_type == "BiasFree":
        y = t / jnp.sqrt(var + eps) * wf
    else:
        y = (t - mu) / jnp.sqrt(var + eps) * wf + bias.astype(jnp.float32)
    return jnp.transpose(y.reshape(B, H, W, C), (0, 3, 1, 2))


# ----------------------------------- main -----------------------------------

if __name__ == "__main__":
    key = jax.random.PRNGKey(0)
    k1, k2, k3 = jax.random.split(key, 3)

    B, C, H, W = 2, 32, 16, 16
    x = jax.random.normal(k1, (B, C, H, W), jnp.float32)
    weight = 1.0 + 0.1 * jax.random.normal(k2, (C,), jnp.float32)
    bias = 0.1 * jax.random.normal(k3, (C,), jnp.float32)

    # WithBias variant (module default when LayerNorm_type != 'BiasFree'), f32
    ln_wb = jax.jit(functools.partial(layer_norm, layer_norm_type="WithBias"))
    out_wb = ln_wb(x, weight, bias)
    jax.block_until_ready(out_wb)
    ref_wb = _ref_layer_norm(x, weight, bias, "WithBias")
    assert out_wb.shape == (B, C, H, W) and out_wb.dtype == jnp.float32
    assert float(jnp.max(jnp.abs(out_wb - ref_wb))) < 1e-4

    # BiasFree variant, f32
    ln_bf = jax.jit(functools.partial(layer_norm, layer_norm_type="BiasFree"))
    out_bf = ln_bf(x, weight, None)
    jax.block_until_ready(out_bf)
    ref_bf = _ref_layer_norm(x, weight, None, "BiasFree")
    assert out_bf.dtype == jnp.float32
    assert float(jnp.max(jnp.abs(out_bf - ref_bf))) < 1e-4

    # Dtype-preserving path: bf16 in -> bf16 out (HBM traffic halved).
    x_bf16 = x.astype(jnp.bfloat16)
    out_bf16 = ln_wb(x_bf16, weight, bias)
    jax.block_until_ready(out_bf16)
    ref_bf16 = _ref_layer_norm(x_bf16, weight, bias, "WithBias")
    assert out_bf16.dtype == jnp.bfloat16
    assert float(jnp.max(jnp.abs(out_bf16.astype(jnp.float32) - ref_bf16))) < 5e-2

    print("KERNEL_OK")
</pallas_src>

<mosaic_0001>
module attributes {stable_mosaic.version = 11 : i64} {
  func.func @_ln_withbias_kernel(%arg0: i32, %arg1: i32, %arg2: memref<1x32x256xf32, #tpu.memory_space<vmem>>, %arg3: memref<1x32x1xf32, #tpu.memory_space<vmem>>, %arg4: memref<1x32x1xf32, #tpu.memory_space<vmem>>, %arg5: memref<1x32x256xf32, #tpu.memory_space<vmem>>) attributes {dimension_semantics = [#tpu.dimension_semantics<parallel>, #tpu.dimension_semantics<parallel>], iteration_bounds = array<i64: 2, 1>, scalar_prefetch = 0 : i64, scratch_operands = 0 : i64, tpu.core_type = #tpu.core_type<tc>, window_params = [{transform_indices = @transform_0, window_bounds = array<i64: 1, 32, 256>}, {pipeline_mode = #tpu.pipeline_mode<synchronous>, transform_indices = @transform_1, window_bounds = array<i64: 1, 32, 1>}, {pipeline_mode = #tpu.pipeline_mode<synchronous>, transform_indices = @transform_2, window_bounds = array<i64: 1, 32, 1>}, {transform_indices = @transform_3, window_bounds = array<i64: 1, 32, 256>}]} {
    %c0 = arith.constant 0 : index
    %c0_0 = arith.constant 0 : index
    %c0_1 = arith.constant 0 : index
    %0 = vector.load %arg2[%c0, %c0_0, %c0_1] : memref<1x32x256xf32, #tpu.memory_space<vmem>>, vector<1x32x256xf32>
    %cst = arith.constant dense<0.000000e+00> : vector<1x256xf32>
    %1 = vector.multi_reduction <add>, %0, %cst [1] : vector<1x32x256xf32> to vector<1x256xf32>
    %2 = vector.shape_cast %1 : vector<1x256xf32> to vector<1x1x256xf32>
    %3 = arith.mulf %0, %0 : vector<1x32x256xf32>
    %cst_2 = arith.constant dense<0.000000e+00> : vector<1x256xf32>
    %4 = vector.multi_reduction <add>, %3, %cst_2 [1] : vector<1x32x256xf32> to vector<1x256xf32>
    %5 = vector.shape_cast %4 : vector<1x256xf32> to vector<1x1x256xf32>
    %cst_3 = arith.constant 3.125000e-02 : f32
    %6 = vector.broadcast %cst_3 : f32 to vector<1x1x256xf32>
    %7 = arith.mulf %2, %6 : vector<1x1x256xf32>
    %cst_4 = arith.constant 3.125000e-02 : f32
    %8 = vector.broadcast %cst_4 : f32 to vector<1x1x256xf32>
    %9 = arith.mulf %5, %8 : vector<1x1x256xf32>
    %10 = arith.mulf %7, %7 : vector<1x1x256xf32>
    %11 = arith.subf %9, %10 : vector<1x1x256xf32>
    %cst_5 = arith.constant 0.000000e+00 : f32
    %12 = vector.broadcast %cst_5 : f32 to vector<1x1x256xf32>
    %13 = arith.maximumf %11, %12 : vector<1x1x256xf32>
    %cst_6 = arith.constant 9.99999974E-6 : f32
    %14 = vector.broadcast %cst_6 : f32 to vector<1x1x256xf32>
    %15 = arith.addf %13, %14 : vector<1x1x256xf32>
    %16 = math.rsqrt %15 : vector<1x1x256xf32>
    %17 = vector.broadcast %7 : vector<1x1x256xf32> to vector<1x32x256xf32>
    %18 = arith.subf %0, %17 : vector<1x32x256xf32>
    %19 = vector.broadcast %16 : vector<1x1x256xf32> to vector<1x32x256xf32>
    %20 = arith.mulf %18, %19 : vector<1x32x256xf32>
    %c0_7 = arith.constant 0 : index
    %c0_8 = arith.constant 0 : index
    %c0_9 = arith.constant 0 : index
    %21 = vector.load %arg3[%c0_7, %c0_8, %c0_9] : memref<1x32x1xf32, #tpu.memory_space<vmem>>, vector<1x32x1xf32>
    %22 = vector.broadcast %21 : vector<1x32x1xf32> to vector<1x32x256xf32>
    %23 = arith.mulf %20, %22 : vector<1x32x256xf32>
    %c0_10 = arith.constant 0 : index
    %c0_11 = arith.constant 0 : index
    %c0_12 = arith.constant 0 : index
    %24 = vector.load %arg4[%c0_10, %c0_11, %c0_12] : memref<1x32x1xf32, #tpu.memory_space<vmem>>, vector<1x32x1xf32>
    %25 = vector.broadcast %24 : vector<1x32x1xf32> to vector<1x32x256xf32>
    %26 = arith.addf %23, %25 : vector<1x32x256xf32>
    %c0_13 = arith.constant 0 : index
    %c0_14 = arith.constant 0 : index
    %c0_15 = arith.constant 0 : index
    %27 = vector.load %arg5[%c0_13, %c0_14, %c0_15] : memref<1x32x256xf32, #tpu.memory_space<vmem>>, vector<1x32x256xf32>
    tpu.vector_store %arg5[%c0_13, %c0_14, %c0_15], %26 {strides = array<i32>} : memref<1x32x256xf32, #tpu.memory_space<vmem>>, vector<1x32x256xf32>,
    return
  }
  func.func @transform_0(%arg0: i32, %arg1: i32) -> (i32, i32, i32) {
    %c0_i32 = arith.constant 0 : i32
    %c0_i32_0 = arith.constant 0 : i32
    return %arg0, %c0_i32, %arg1 : i32, i32, i32
  }
  func.func @transform_1(%arg0: i32, %arg1: i32) -> (i32, i32, i32) {
    %c0_i32 = arith.constant 0 : i32
    %c0_i32_0 = arith.constant 0 : i32
    %c0_i32_1 = arith.constant 0 : i32
    %c0_i32_2 = arith.constant 0 : i32
    return %c0_i32, %c0_i32_0, %c0_i32_1 : i32, i32, i32
  }
  func.func @transform_2(%arg0: i32, %arg1: i32) -> (i32, i32, i32) {
    %c0_i32 = arith.constant 0 : i32
    %c0_i32_0 = arith.constant 0 : i32
    %c0_i32_1 = arith.constant 0 : i32
    %c0_i32_2 = arith.constant 0 : i32
    return %c0_i32, %c0_i32_0, %c0_i32_1 : i32, i32, i32
  }
  func.func @transform_3(%arg0: i32, %arg1: i32) -> (i32, i32, i32) {
    %c0_i32 = arith.constant 0 : i32
    %c0_i32_0 = arith.constant 0 : i32
    return %arg0, %c0_i32, %arg1 : i32, i32, i32
  }
}

</mosaic_0001>

<llo_original>
// kernel: layer_norm.1
$region0: #{layer_norm.1}
  #allocation0 [shape = 'u32[]', space=smem, size = 0x4, offset = 0x4, fixed_abs, tag = 'smem constant byte address 0x4 - core index']
  #allocation1 [shape = 'u32[144,128]{1,0:T(1,128)}', space=vmem, size = 0x12000, scoped, tag = 'internal scratch']
  %s0 = inlined_call_operand.vmem [shape: f32[2,32,256], index: 0, kind: input, shape index: {}]
  %s1 = inlined_call_operand.vmem [shape: f32[1,32,1], index: 1, kind: input, shape index: {}]
  %s2 = inlined_call_operand.vmem [shape: f32[1,32,1], index: 2, kind: input, shape index: {}]
  %s3 = inlined_call_operand.vmem [shape: f32[2,32,256], index: 3, kind: output, shape index: {}]
  %s4 = sld [smem:[#allocation0]]
  $region45: #{layer_norm.1} parent=0
    _
  %s6 = ssub.s32 1, %s4
  %s7 = scalar_select 0, %s6, %s4
  loop: start=0, step=1, limit=4
  $region2: #{layer_norm.1} parent=0 // loop_pre_header
    _
  $region3: #{layer_norm.1} parent=0 // loop_header
    %s9 = sphi 0, %s13
    %p10 = scmp.ge.s32.totalorder %s9, 4
    %s16 = sphi 0, %s28
    %s17 = sphi 0, %s24
    %s18 = sphi 0, %s16
    %s19 = sphi 0, %s17
    %s20 = sphi 0, %s18
    %s21 = sphi 0, %s19
    %s33 = sphi 0, %s35
    %s36 = sphi 0, %s33
    %s37 = sphi 0, %s36
    %s53 = sphi 0, %s37
    %s57 = sphi 0, %s57
    %s59 = sphi 0, %s57
    %s60 = sphi 0, %s59
    %s74 = sphi 0, %s60
    %s78 = sphi 0, %s78
    %s80 = sphi 0, %s78
    %s81 = sphi 0, %s80
    %s95 = sphi 0, %s81
    %s103 = sphi 0, %s105
    %s106 = sphi 0, %s103
    %s107 = sphi 0, %s106
    %s123 = sphi 0, %s107
  $region4: #{layer_norm.1} parent=0 // loop_header_branch
    %12 = sbr.rel (%p10) target = $region8
  $region5: #{layer_norm.1} parent=0 // loop_body
    %s14 = ssub.s32 %s9, 1
    %s15 = ssub.s32 %s9, 2
    %s22 = sadd.s32 1, %s17
    %p23 = scmp.ge.s32.totalorder %s22, 1
    %s24 = scalar_select %p23, 0, %s22
    %s25 = sadd.s32 1, %s16
    %s26 = scalar_select %p23, %s25, %s16
    %p27 = scmp.ge.s32.totalorder %s26, 2
    %s28 = scalar_select %p27, 0, %s26
    %s29 = ssub.s32 %s16, %s28
    %s30 = ssub.s32 %s17, %s24
    %s31 = sor.u32 %s29, %s30
    %p32 = scmp.eq.s32.totalorder %s31, 0
    %s34 = sadd.s32 %s33, 1
    %s35 = scalar_select %p32, %s33, %s34
    %p38 = pneg %p32
    %p39 = scmp.eq.s32.totalorder %s9, 1
    %p40 = por %p38, %p39
    %p41 = scmp.ne.s32.totalorder %s33, %s36
    %p42 = scmp.eq.s32.totalorder %s9, 0
    %p43 = por %p41, %p42
    %p44 = scmp.ne.s32.totalorder %s33, %s36
    %p45 = scmp.eq.s32.totalorder %s14, 1
    %p46 = por %p44, %p45
    %p47 = scmp.ne.s32.totalorder %s36, %s37
    %p48 = scmp.eq.s32.totalorder %s14, 0
    %p49 = por %p47, %p48
    %p50 = scmp.ne.s32.totalorder %s36, %s37
    %p51 = scmp.eq.s32.totalorder %s15, 1
    %p52 = por %p50, %p51
    %p54 = scmp.ne.s32.totalorder %s37, %s53
    %p55 = scmp.eq.s32.totalorder %s15, 0
    %p56 = por %p54, %p55
    %s58 = sadd.s32 %s57, 1
    %p61 = scmp.eq.s32.totalorder %s9, 1
    %p62 = scmp.ne.s32.totalorder %s57, %s59
    %p63 = scmp.eq.s32.totalorder %s9, 0
    %p64 = por %p62, %p63
    %p65 = scmp.ne.s32.totalorder %s57, %s59
    %p66 = scmp.eq.s32.totalorder %s14, 1
    %p67 = por %p65, %p66
    %p68 = scmp.ne.s32.totalorder %s59, %s60
    %p69 = scmp.eq.s32.totalorder %s14, 0
    %p70 = por %p68, %p69
    %p71 = scmp.ne.s32.totalorder %s59, %s60
    %p72 = scmp.eq.s32.totalorder %s15, 1
    %p73 = por %p71, %p72
    %p75 = scmp.ne.s32.totalorder %s60, %s74
    %p76 = scmp.eq.s32.totalorder %s15, 0
    %p77 = por %p75, %p76
    %s79 = sadd.s32 %s78, 1
    %p82 = scmp.eq.s32.totalorder %s9, 1
    %p83 = scmp.ne.s32.totalorder %s78, %s80
    %p84 = scmp.eq.s32.totalorder %s9, 0
    %p85 = por %p83, %p84
    %p86 = scmp.ne.s32.totalorder %s78, %s80
    %p87 = scmp.eq.s32.totalorder %s14, 1
    %p88 = por %p86, %p87
    %p89 = scmp.ne.s32.totalorder %s80, %s81
    %p90 = scmp.eq.s32.totalorder %s14, 0
    %p91 = por %p89, %p90
    %p92 = scmp.ne.s32.totalorder %s80, %s81
    %p93 = scmp.eq.s32.totalorder %s15, 1
    %p94 = por %p92, %p93
    %p96 = scmp.ne.s32.totalorder %s81, %s95
    %p97 = scmp.eq.s32.totalorder %s15, 0
    %p98 = por %p96, %p97
    %s99 = ssub.s32 %s16, %s28
    %s100 = ssub.s32 %s17, %s24
    %s101 = sor.u32 %s99, %s100
    %p102 = scmp.eq.s32.totalorder %s101, 0
    %s104 = sadd.s32 %s103, 1
    %s105 = scalar_select %p102, %s103, %s104
    %p108 = pneg %p102
    %p109 = scmp.eq.s32.totalorder %s9, 1
    %p110 = por %p108, %p109
    %p111 = scmp.ne.s32.totalorder %s103, %s106
    %p112 = scmp.eq.s32.totalorder %s9, 0
    %p113 = por %p111, %p112
    %p114 = scmp.ne.s32.totalorder %s103, %s106
    %p115 = scmp.eq.s32.totalorder %s14, 1
    %p116 = por %p114, %p115
    %p117 = scmp.ne.s32.totalorder %s106, %s107
    %p118 = scmp.eq.s32.totalorder %s14, 0
    %p119 = por %p117, %p118
    %p120 = scmp.ne.s32.totalorder %s106, %s107
    %p121 = scmp.eq.s32.totalorder %s15, 1
    %p122 = por %p120, %p121
    %p124 = scmp.ne.s32.totalorder %s107, %s123
    %p125 = scmp.eq.s32.totalorder %s15, 0
    %p126 = por %p124, %p125
    %p127 = scmp.le.s32.totalorder 1, %s9
    %p128 = scmp.lt.s32.totalorder %s9, 3
    %p129 = pnand %p127, %p128
    %p130 = pneg %p129
    // Predicated region
    $region9: #{layer_norm.1} parent=5 // pred_check
      _
    $region10: #{layer_norm.1} parent=5 // pred_check_branch
      %132 = sbr.rel (%p129) target = $region12
    $region11: #{layer_norm.1} parent=5 // pred_region
      %s133 = ssub.s32 %s9, 1
      // Predicated region
      $region13: #{layer_norm.1} parent=11 // pred_check
        %p134 = pneg %p70
      $region14: #{layer_norm.1} parent=11 // pred_check_branch
        %136 = sbr.rel (%p134) target = $region16
      $region15: #{layer_norm.1} parent=11 // pred_region
        _
      $region16: #{layer_norm.1} parent=11 // pred_fallthru
        _
      // Predicated region
      $region17: #{layer_norm.1} parent=11 // pred_check
        %p137 = pneg %p91
      $region18: #{layer_norm.1} parent=11 // pred_check_branch
        %139 = sbr.rel (%p137) target = $region20
      $region19: #{layer_norm.1} parent=11 // pred_region
        _
      $region20: #{layer_norm.1} parent=11 // pred_fallthru
        _
    $region12: #{layer_norm.1} parent=5 // pred_fallthru
      _
    %p140 = scmp.lt.s32.totalorder %s9, 2
    // Predicated region
    $region21: #{layer_norm.1} parent=5 // pred_check
      %p141 = pneg %p140
    $region22: #{layer_norm.1} parent=5 // pred_check_branch
      %143 = sbr.rel (%p141) target = $region24
    $region23: #{layer_norm.1} parent=5 // pred_region
      // Predicated region
      $region25: #{layer_norm.1} parent=23 // pred_check
        %p144 = pneg %p43
      $region26: #{layer_norm.1} parent=23 // pred_check_branch
        %146 = sbr.rel (%p144) target = $region28
      $region27: #{layer_norm.1} parent=23 // pred_region
        %s147 = smul.u32 2, %s17
        %p148 = scmp.lt.s32.totalorder %s16, 1
        %s149 = scalar_select %p148, %s16, 1
        %p150 = scmp.lt.s32.totalorder %s147, 1
        %s151 = scalar_select %p150, %s147, 1
        %s152 = smul.addr %s149, 8
        %s153 = sadd.s32 %s151, %s152
        %s154 = smul.addr %s153, 8
        %s155 = scalar_lea.vmem %s0, %s154
        %s156 = smul.u32 2, %s17
      $region28: #{layer_norm.1} parent=23 // pred_fallthru
        _
    $region24: #{layer_norm.1} parent=5 // pred_fallthru
      _
    %p157 = scmp.le.s32.totalorder 1, %s9
    %p158 = scmp.lt.s32.totalorder %s9, 3
    %p159 = pnand %p157, %p158
    %p160 = pneg %p159
    // Predicated region
    $region29: #{layer_norm.1} parent=5 // pred_check
      _
    $region30: #{layer_norm.1} parent=5 // pred_check_branch
      %162 = sbr.rel (%p159) target = $region32
    $region31: #{layer_norm.1} parent=5 // pred_region
      %s163 = ssub.s32 %s9, 1
      %s164 = smul.u32 2, %s19
      %p165 = scmp.lt.s32.totalorder %s18, 1
      %s166 = scalar_select %p165, %s18, 1
      %p167 = scmp.lt.s32.totalorder %s164, 1
      %s168 = scalar_select %p167, %s164, 1
      %s169 = smul.addr %s166, 8
      %s170 = sadd.s32 %s168, %s169
      %s171 = smul.addr %s170, 8
      %s172 = scalar_lea.vmem %s0, %s171
      %p173 = pneg %p49
      %p174 = pneg %p46
      %p175 = pneg %p70
      %p176 = pneg %p67
      %p177 = pneg %p91
      %p178 = pneg %p88
      %p179 = pneg %p119
      %p180 = pneg %p116
      %s181 = smul.u32 2, %s19
      %p182 = scmp.lt.s32.totalorder %s18, 1
      %s183 = scalar_select %p182, %s18, 1
      %p184 = scmp.lt.s32.totalorder %s181, 1
      %s185 = scalar_select %p184, %s181, 1
      %s186 = smul.addr %s183, 8
      %s187 = sadd.s32 %s185, %s186
      %s188 = smul.addr %s187, 8
      %s189 = scalar_lea.vmem %s3, %s188
      %s190 = smul.u32 2, %s19
      %p191 = scmp.lt.s32.totalorder %s18, 1
      %s192 = scalar_select %p191, %s18, 1
      %p193 = scmp.lt.s32.totalorder %s190, 1
      %s194 = scalar_select %p193, %s190, 1
      %s195 = smul.addr %s192, 8
      %s196 = sadd.s32 %s194, %s195
      %s197 = smul.addr %s196, 8
      %s198 = scalar_lea.vmem %s0, %s197
      %s199 = smul.u32 2, %s19
      %s200 = smul.u32 2, %s19
      %p201 = scmp.lt.s32.totalorder %s18, 1
      %s202 = scalar_select %p201, %s18, 1
      %p203 = scmp.lt.s32.totalorder %s200, 1
      %s204 = scalar_select %p203, %s200, 1
      %s205 = smul.addr %s202, 8
      %s206 = sadd.s32 %s204, %s205
      %s207 = smul.addr %s206, 8
      %s208 = scalar_lea.vmem %s3, %s207
      %s209 = smul.u32 2, %s19
      %v210 = vld [vmem:[%s198] sm:$0xff]
      %v211 = vld [vmem:[%s198 + $0x8] sm:$0xff]
      %v212 = vld [vmem:[%s198 + $0x10] sm:$0xff]
      %v213 = vld [vmem:[%s198 + $0x18] sm:$0xff]
      %v214 = vld [vmem:[%s198 + $0x20] sm:$0xff]
      %v215 = vld [vmem:[%s198 + $0x28] sm:$0xff]
      %v216 = vld [vmem:[%s198 + $0x30] sm:$0xff]
      %v217 = vld [vmem:[%s198 + $0x38] sm:$0xff]
      %v218 = vadd.f32 %v210, %v212
      %v219 = vadd.f32 %v218, %v214
      %v220 = vadd.f32 %v219, %v216
      %v221 = vrot.slane %v220, 4
      %v222 = vadd.f32 %v220, %v221
      %v223 = vrot.slane %v222, 2
      %v224 = vadd.f32 %v222, %v223
      %v225 = vrot.slane %v224, 1
      %v226 = vadd.f32 %v224, %v225
      %v227 = vadd.f32 %v211, %v213
      %v228 = vadd.f32 %v227, %v215
      %v229 = vadd.f32 %v228, %v217
      %v230 = vrot.slane %v229, 4
      %v231 = vadd.f32 %v229, %v230
      %v232 = vrot.slane %v231, 2
      %v233 = vadd.f32 %v231, %v232
      %v234 = vrot.slane %v233, 1
      %v235 = vadd.f32 %v233, %v234
      %v236 = vmul.f32 %v210, %v210
      %v237 = vmul.f32 %v211, %v211
      %v238 = vmul.f32 %v212, %v212
      %v239 = vmul.f32 %v213, %v213
      %v240 = vmul.f32 %v214, %v214
      %v241 = vmul.f32 %v215, %v215
      %v242 = vmul.f32 %v216, %v216
      %v243 = vmul.f32 %v217, %v217
      %v244 = vadd.f32 %v236, %v238
      %v245 = vadd.f32 %v244, %v240
      %v246 = vadd.f32 %v245, %v242
      %v247 = vrot.slane %v246, 4
      %v248 = vadd.f32 %v246, %v247
      %v249 = vrot.slane %v248, 2
      %v250 = vadd.f32 %v248, %v249
      %v251 = vrot.slane %v250, 1
      %v252 = vadd.f32 %v250, %v251
      %v253 = vadd.f32 %v237, %v239
      %v254 = vadd.f32 %v253, %v241
      %v255 = vadd.f32 %v254, %v243
      %v256 = vrot.slane %v255, 4
      %v257 = vadd.f32 %v255, %v256
      %v258 = vrot.slane %v257, 2
      %v259 = vadd.f32 %v257, %v258
      %v260 = vrot.slane %v259, 1
      %v261 = vadd.f32 %v259, %v260
      %v262 = vmul.f32 %v226, 0.03125
      %v263 = vmul.f32 %v235, 0.03125
      %v264 = vmul.f32 %v252, 0.03125
      %v265 = vmul.f32 %v261, 0.03125
      %v266 = vmul.f32 %v262, %v262
      %v267 = vmul.f32 %v263, %v263
      %v268 = vsub.f32 %v264, %v266
      %v269 = vsub.f32 %v265, %v267
      %v270 = vmax.f32 %v268, 0.0
      %v271 = vmax.f32 %v269, 0.0
      %v272 = vadd.f32 %v270, 1e-05
      %v273 = vadd.f32 %v271, 1e-05
      %v274 = vrsqrt.pop %v272
      %v275 = vrsqrt.pop %v273
      %v276 = vsub.f32 %v210, %v262
      %v277 = vsub.f32 %v211, %v263
      %v278 = vsub.f32 %v212, %v262
      %v279 = vsub.f32 %v213, %v263
      %v280 = vsub.f32 %v214, %v262
      %v281 = vsub.f32 %v215, %v263
      %v282 = vsub.f32 %v216, %v262
      %v283 = vsub.f32 %v217, %v263
      %v284 = vmul.f32 %v276, %v274
      %v285 = vmul.f32 %v277, %v275
      %v286 = vmul.f32 %v278, %v274
      %v287 = vmul.f32 %v279, %v275
      %v288 = vmul.f32 %v280, %v274
      %v289 = vmul.f32 %v281, %v275
      %v290 = vmul.f32 %v282, %v274
      %v291 = vmul.f32 %v283, %v275
      %v292 = vld [vmem:[%s1] sm:$0xff]
      %v293 = vld [vmem:[%s1 + $0x8] sm:$0xff]
      %v294 = vld [vmem:[%s1 + $0x10] sm:$0xff]
      %v295 = vld [vmem:[%s1 + $0x18] sm:$0xff]
      %297 = vset.pattern.permute.xlu0 0
      %298 = vperm.xlu0 %297, %v292
      %v299 = vpop.permute.xlu0 %298
      %302 = vset.pattern.permute.xlu0 0
      %303 = vperm.xlu0 %302, %v293
      %v304 = vpop.permute.xlu0 %303
      %307 = vset.pattern.permute.xlu0 0
      %308 = vperm.xlu0 %307, %v294
      %v309 = vpop.permute.xlu0 %308
      %312 = vset.pattern.permute.xlu0 0
      %313 = vperm.xlu0 %312, %v295
      %v314 = vpop.permute.xlu0 %313
      %v316 = vmul.f32 %v284, %v299
      %v317 = vmul.f32 %v285, %v299
      %v318 = vmul.f32 %v286, %v304
      %v319 = vmul.f32 %v287, %v304
      %v320 = vmul.f32 %v288, %v309
      %v321 = vmul.f32 %v289, %v309
      %v322 = vmul.f32 %v290, %v314
      %v323 = vmul.f32 %v291, %v314
      %v324 = vld [vmem:[%s2] sm:$0xff]
      %v325 = vld [vmem:[%s2 + $0x8] sm:$0xff]
      %v326 = vld [vmem:[%s2 + $0x10] sm:$0xff]
      %v327 = vld [vmem:[%s2 + $0x18] sm:$0xff]
      %329 = vset.pattern.permute.xlu0 0
      %330 = vperm.xlu0 %329, %v324
      %v331 = vpop.permute.xlu0 %330
      %334 = vset.pattern.permute.xlu0 0
      %335 = vperm.xlu0 %334, %v325
      %v336 = vpop.permute.xlu0 %335
      %339 = vset.pattern.permute.xlu0 0
      %340 = vperm.xlu0 %339, %v326
      %v341 = vpop.permute.xlu0 %340
      %344 = vset.pattern.permute.xlu0 0
      %345 = vperm.xlu0 %344, %v327
      %v346 = vpop.permute.xlu0 %345
      %v348 = vadd.f32 %v316, %v331
      %v349 = vadd.f32 %v317, %v331
      %v350 = vadd.f32 %v318, %v336
      %v351 = vadd.f32 %v319, %v336
      %v352 = vadd.f32 %v320, %v341
      %v353 = vadd.f32 %v321, %v341
      %v354 = vadd.f32 %v322, %v346
      %v355 = vadd.f32 %v323, %v346
      %356 = vst [vmem:[%s208] sm:$0xff] %v348
      %357 = vst [vmem:[%s208 + $0x8] sm:$0xff] %v349
      %358 = vst [vmem:[%s208 + $0x10] sm:$0xff] %v350
      %359 = vst [vmem:[%s208 + $0x18] sm:$0xff] %v351
      %360 = vst [vmem:[%s208 + $0x20] sm:$0xff] %v352
      %361 = vst [vmem:[%s208 + $0x28] sm:$0xff] %v353
      %362 = vst [vmem:[%s208 + $0x30] sm:$0xff] %v354
      %363 = vst [vmem:[%s208 + $0x38] sm:$0xff] %v355
      %s364 = smul.u32 2, %s19
      %p365 = scmp.lt.s32.totalorder %s18, 1
      %s366 = scalar_select %p365, %s18, 1
      %p367 = scmp.lt.s32.totalorder %s364, 1
      %s368 = scalar_select %p367, %s364, 1
      %s369 = smul.addr %s366, 8
      %s370 = sadd.s32 %s368, %s369
      %s371 = smul.addr %s370, 8
      %s372 = scalar_lea.vmem %s3, %s371
      // Predicated region
      $region33: #{layer_norm.1} parent=31 // pred_check
        %p373 = pneg %p116
      $region34: #{layer_norm.1} parent=31 // pred_check_branch
        %375 = sbr.rel (%p373) target = $region36
      $region35: #{layer_norm.1} parent=31 // pred_region
        %s376 = smul.u32 2, %s19
      $region36: #{layer_norm.1} parent=31 // pred_fallthru
        _
    $region32: #{layer_norm.1} parent=5 // pred_fallthru
      _
    %p377 = scmp.le.s32.totalorder 2, %s9
    // Predicated region
    $region37: #{layer_norm.1} parent=5 // pred_check
      %p378 = pneg %p377
    $region38: #{layer_norm.1} parent=5 // pred_check_branch
      %380 = sbr.rel (%p378) target = $region40
    $region39: #{layer_norm.1} parent=5 // pred_region
      %s381 = ssub.s32 %s9, 2
      // Predicated region
      $region41: #{layer_norm.1} parent=39 // pred_check
        %p382 = pneg %p122
      $region42: #{layer_norm.1} parent=39 // pred_check_branch
        %384 = sbr.rel (%p382) target = $region44
      $region43: #{layer_norm.1} parent=39 // pred_region
        %s385 = smul.u32 2, %s21
        %p386 = scmp.lt.s32.totalorder %s20, 1
        %s387 = scalar_select %p386, %s20, 1
        %p388 = scmp.lt.s32.totalorder %s385, 1
        %s389 = scalar_select %p388, %s385, 1
        %s390 = smul.addr %s387, 8
        %s391 = sadd.s32 %s389, %s390
        %s392 = smul.addr %s391, 8
        %s393 = scalar_lea.vmem %s3, %s392
      $region44: #{layer_norm.1} parent=39 // pred_fallthru
        _
    $region40: #{layer_norm.1} parent=5 // pred_fallthru
      _
  $region6: #{layer_norm.1} parent=0 // loop_footer
    %s13 = sadd.s32 1, %s9
  $region7: #{layer_norm.1} parent=0 // loop_footer_branch
    %8 = sbr.rel target = $region3
  $region8: #{layer_norm.1} parent=0 // loop_exit
    _

</llo_original>
